<compile_context>
chip_gen: v7x
topology: tpu7x:2x2x1
jax: 0.10.0
libtpu: 0.0.40
codegen_flags: <defaults>
</compile_context>

<pallas_src>
import functools
import math

import jax
import jax.numpy as jnp
from jax.experimental import pallas as pl
from jax.experimental.pallas import tpu as pltpu


def _rope_kernel(offset_ref, posoff_ref, invfreq_ref, out_ref, *,
                 pack, tile_rows, lane_width):
    """Write one (tile_rows, pack*dim) slab of the RoPE cache.

    Each output row packs `pack` consecutive positions, each carrying its
    `dim`-wide concat([freqs, freqs]) entries, keeping the lane axis dense.
    """
    i = pl.program_id(0)
    offset = offset_ref[0]                                            # SMEM scalar
    row = jax.lax.broadcasted_iota(jnp.int32, (tile_rows, lane_width), 0)
    # absolute position of every output element (int32, cast once at the mul)
    pos = offset + (i * tile_rows + row) * pack + posoff_ref[...]     # (tile_rows, lane_width)
    out_ref[...] = pos.astype(jnp.float32) * invfreq_ref[...]         # outer-product by broadcast


def rotary_embedding(max_seq_len, dim, *, base=10000.0, offset=0, ntk_alpha=1.0,
                     target_tile_bytes=4 << 20):
    """Returns the rotary position-embedding cache, shape (1, max_seq_len, 1, dim), f32."""
    assert dim % 2 == 0, "dim must be even"

    # --- frequency setup (tiny, plain JAX; identical formula to torch) ------
    ntk_base = base * (ntk_alpha ** (dim / (dim - 2)))
    inv_freq = 1.0 / (ntk_base ** (jnp.arange(0, dim, 2, dtype=jnp.float32) / dim))
    inv_freq_full = jnp.concatenate([inv_freq, inv_freq])             # (dim,)  == cat(freqs,freqs) pattern

    # --- lane packing: make the output last dim a multiple of 128 -----------
    if dim % 128 == 0:
        pack = 1
    else:
        pack = math.lcm(dim, 128) // dim
        if max_seq_len % pack != 0:
            pack = 1            # exact out_shape (no slice copy) wins over lane density
    lane_width = pack * dim
    rows_total = max_seq_len // pack

    invfreq_row = jnp.tile(inv_freq_full, pack).reshape(1, lane_width)              # f32
    posoff_row = jnp.repeat(jnp.arange(pack, dtype=jnp.int32), dim).reshape(1, lane_width)
    offset_arr = jnp.asarray([offset], dtype=jnp.int32)               # scalar prefetch (SMEM)

    # --- seq tiling: largest tile under ~target_tile_bytes per output buffer
    rows_per_tile = max(8, (target_tile_bytes // (4 * lane_width)) // 8 * 8)
    tile_rows = rows_total if rows_total <= rows_per_tile else rows_per_tile
    tile_rows = max(tile_rows, 1)
    n_tiles = pl.cdiv(rows_total, tile_rows)

    kernel = functools.partial(_rope_kernel, pack=pack, tile_rows=tile_rows,
                               lane_width=lane_width)

    out = pl.pallas_call(
        kernel,
        out_shape=jax.ShapeDtypeStruct((rows_total, lane_width), jnp.float32),
        grid_spec=pltpu.PrefetchScalarGridSpec(
            num_scalar_prefetch=1,                                    # offset lives in SMEM
            grid=(n_tiles,),
            in_specs=[
                pl.BlockSpec((1, lane_width), lambda i, off: (0, 0)),  # posoff_row
                pl.BlockSpec((1, lane_width), lambda i, off: (0, 0)),  # invfreq_row
            ],
            out_specs=pl.BlockSpec((tile_rows, lane_width), lambda i, off: (i, 0)),
        ),
        compiler_params=pltpu.CompilerParams(
            dimension_semantics=("parallel",)),                       # megacore sharding on v7x
    )(offset_arr, posoff_row, invfreq_row)

    # Free reshape (row-major contiguous) to the PyTorch layout (1, n, 1, d).
    return out.reshape(1, max_seq_len, 1, dim)


def _reference(max_seq_len, dim, *, base=10000.0, offset=0, ntk_alpha=1.0):
    ntk_base = base * (ntk_alpha ** (dim / (dim - 2)))
    inv_freq = 1.0 / (ntk_base ** (jnp.arange(0, dim, 2, dtype=jnp.float32) / dim))
    seqlen = max_seq_len + offset
    seq = jnp.arange(seqlen, dtype=jnp.float32)
    freqs = jnp.outer(seq, inv_freq)
    emb = jnp.concatenate([freqs, freqs], axis=-1)
    emb = emb.reshape(1, seqlen, 1, dim)
    return emb[:, offset:offset + max_seq_len]


if __name__ == "__main__":
    _ = jax.random.PRNGKey(0)   # module has no tensor inputs; kept for convention

    configs = [
        # (max_seq_len, dim, offset, ntk_alpha, target_tile_bytes)
        (8,   32, 2, 1.0, 4 << 20),   # small, lane-packed (pack=4), single tile
        (300, 64, 5, 2.0, 4 << 20),   # NTK-scaled base, pack=2, single tile
        (100, 32, 0, 1.0, 8 << 10),   # tiny tile budget -> multi-tile + ragged last block
        (24,  96, 1, 1.0, 4 << 20),   # dim not a divisor of 128, pack=4 (lane_width=384)
    ]
    for (n, d, off, alpha, tb) in configs:
        out = rotary_embedding(n, d, offset=off, ntk_alpha=alpha, target_tile_bytes=tb)
        out = jax.block_until_ready(out)
        ref = _reference(n, d, offset=off, ntk_alpha=alpha)
        assert out.shape == (1, n, 1, d), (out.shape, (1, n, 1, d))
        assert out.dtype == jnp.float32
        assert jnp.allclose(out, ref, rtol=1e-6, atol=1e-6), f"mismatch for {(n, d, off, alpha)}"

    print("KERNEL_OK")
</pallas_src>

<mosaic_0001>
module attributes {stable_mosaic.version = 11 : i64} {
  func.func @_rope_kernel(%arg0: i32, %arg1: memref<1xi32, #tpu.memory_space<smem>>, %arg2: memref<1x128xi32, #tpu.memory_space<vmem>>, %arg3: memref<1x128xf32, #tpu.memory_space<vmem>>, %arg4: memref<2x128xf32, #tpu.memory_space<vmem>>) attributes {dimension_semantics = [#tpu.dimension_semantics<parallel>], iteration_bounds = array<i64: 1>, scalar_prefetch = 1 : i64, scratch_operands = 0 : i64, tpu.core_type = #tpu.core_type<tc>, window_params = [{pipeline_mode = #tpu.pipeline_mode<synchronous>, transform_indices = @transform_0, window_bounds = array<i64: 1, 128>}, {pipeline_mode = #tpu.pipeline_mode<synchronous>, transform_indices = @transform_1, window_bounds = array<i64: 1, 128>}, {transform_indices = @transform_2, window_bounds = array<i64: 2, 128>}]} {
    %c0 = arith.constant 0 : index
    %0 = memref.load %arg1[%c0] : memref<1xi32, #tpu.memory_space<smem>>
    %1 = tpu.iota {dimensions = array<i32: 0>} : vector<2x128xi32>
    %c2_i32 = arith.constant 2 : i32
    %2 = arith.muli %arg0, %c2_i32 : i32
    %3 = vector.broadcast %2 : i32 to vector<2x128xi32>
    %4 = arith.addi %3, %1 : vector<2x128xi32>
    %c4_i32 = arith.constant 4 : i32
    %5 = vector.broadcast %c4_i32 : i32 to vector<2x128xi32>
    %6 = arith.muli %4, %5 : vector<2x128xi32>
    %7 = vector.broadcast %0 : i32 to vector<2x128xi32>
    %8 = arith.addi %7, %6 : vector<2x128xi32>
    %c0_0 = arith.constant 0 : index
    %c0_1 = arith.constant 0 : index
    %9 = vector.load %arg2[%c0_0, %c0_1] : memref<1x128xi32, #tpu.memory_space<vmem>>, vector<1x128xi32>
    %10 = vector.broadcast %9 : vector<1x128xi32> to vector<2x128xi32>
    %11 = arith.addi %8, %10 : vector<2x128xi32>
    %12 = arith.sitofp %11 : vector<2x128xi32> to vector<2x128xf32>
    %c0_2 = arith.constant 0 : index
    %c0_3 = arith.constant 0 : index
    %13 = vector.load %arg3[%c0_2, %c0_3] : memref<1x128xf32, #tpu.memory_space<vmem>>, vector<1x128xf32>
    %14 = vector.broadcast %13 : vector<1x128xf32> to vector<2x128xf32>
    %15 = arith.mulf %12, %14 : vector<2x128xf32>
    %c0_4 = arith.constant 0 : index
    %c0_5 = arith.constant 0 : index
    %16 = vector.load %arg4[%c0_4, %c0_5] : memref<2x128xf32, #tpu.memory_space<vmem>>, vector<2x128xf32>
    tpu.vector_store %arg4[%c0_4, %c0_5], %15 {strides = array<i32>} : memref<2x128xf32, #tpu.memory_space<vmem>>, vector<2x128xf32>,
    return
  }
  func.func @transform_0(%arg0: i32, %arg1: memref<1xi32, #tpu.memory_space<smem>>) -> (i32, i32) {
    %c0_i32 = arith.constant 0 : i32
    %c0_i32_0 = arith.constant 0 : i32
    %c0_i32_1 = arith.constant 0 : i32
    return %c0_i32, %c0_i32_0 : i32, i32
  }
  func.func @transform_1(%arg0: i32, %arg1: memref<1xi32, #tpu.memory_space<smem>>) -> (i32, i32) {
    %c0_i32 = arith.constant 0 : i32
    %c0_i32_0 = arith.constant 0 : i32
    %c0_i32_1 = arith.constant 0 : i32
    return %c0_i32, %c0_i32_0 : i32, i32
  }
  func.func @transform_2(%arg0: i32, %arg1: memref<1xi32, #tpu.memory_space<smem>>) -> (i32, i32) {
    %c0_i32 = arith.constant 0 : i32
    %c0_i32_0 = arith.constant 0 : i32
    return %arg0, %c0_i32 : i32, i32
  }
}

</mosaic_0001>

<llo_original>
// kernel: tpu_custom_call.1
$region0: #{tpu_custom_call.1}
  #allocation0 [shape = 'u32[]', space=smem, size = 0x4, offset = 0x4, fixed_abs, tag = 'smem constant byte address 0x4 - core index']
  #allocation1 [shape = 'u32[144,128]{1,0:T(1,128)}', space=vmem, size = 0x12000, scoped, tag = 'internal scratch']
  #allocation2 [shape = 's32[1]{0}', space=sflag, size = 0x4, scoped, tag = 'scoped memory for tpu_custom_call.1']
  #allocation3 [shape = 's32[1]{0:T(128)S(6)}', space=smem, size = 0x200, scoped, tag = 'prefetched SMEM operand 0']
  %s0 = inlined_call_operand.<no memory space> [shape: s32[1], index: 0, kind: input, shape index: {}]
  %s1 = inlined_call_operand.vmem [shape: s32[1,128], index: 1, kind: input, shape index: {}]
  %s2 = inlined_call_operand.vmem [shape: f32[1,128], index: 2, kind: input, shape index: {}]
  %s3 = inlined_call_operand.hbm [shape: f32[2,128], index: 3, kind: output, shape index: {}]
  %s4 = sld [smem:[#allocation0]]
  $region18: #{tpu_custom_call.1} parent=0
    _
  %s6 = ssub.s32 1, %s4
  %s7 = scalar_select 0, %s6, %s4
  %8 = sst [smem:[#allocation3]] %s0
  $region1: #{tpu_custom_call.1} parent=0
    #allocation4 [shape = 'u8[1024]{0}', space=vmem, size = 0x400, scoped, tag = 'output window, operand 0, single buffered']
    #allocation5 [shape = 's32[1]{0}', space=sflag, size = 0x4, scoped, tag = 'scoped memory for tpu_custom_call.1']
    %9 = vsyncpa [#allocation5], 0
    // Predicated region
    $region2: #{tpu_custom_call.1} parent=1 // pred_check
      _
    $region3: #{tpu_custom_call.1} parent=1 // pred_check_branch
      %11 = sbr.rel (0) target = $region5
    $region4: #{tpu_custom_call.1} parent=1 // pred_region
      _
    $region5: #{tpu_custom_call.1} parent=1 // pred_fallthru
      _
    // Predicated region
    $region6: #{tpu_custom_call.1} parent=1 // pred_check
      _
    $region7: #{tpu_custom_call.1} parent=1 // pred_check_branch
      %13 = sbr.rel (0) target = $region9
    $region8: #{tpu_custom_call.1} parent=1 // pred_region
      _
    $region9: #{tpu_custom_call.1} parent=1 // pred_fallthru
      _
    %s14 = sld [smem:[#allocation3]]
    %v15 = vlaneseq
    %v16 = vshrl.u32 %v15, 7
    %s17 = smul.u32 0, 2
    %v18 = vstv %s17
    %v19 = vadd.s32 %v18, %v16
    %v20 = vmul.u32 %v19, 4
    %v21 = vstv %s14
    %v22 = vadd.s32 %v21, %v20
    %v23 = vld [vmem:[%s1] sm:$0x1]
    %v24 = vlaneseq
    %v25 = vshrl.u32 %v24, 7
    %v26 = vsub.s32 0, %v25
    %v27 = vrot.slane %v23, %v26
    %v28 = vadd.s32 %v22, %v27
    %v29 = vcvt.s32.f32 %v28
    %v30 = vld [vmem:[%s2] sm:$0x1]
    %v32 = vlaneseq
    %v33 = vshrl.u32 %v32, 7
    %v34 = vsub.s32 0, %v33
    %v35 = vrot.slane %v30, %v34
    %v37 = vmul.f32 %v29, %v35
    %38 = vst [vmem:[#allocation4] sm:$0x3] %v37
    // Predicated region
    $region10: #{tpu_custom_call.1} parent=1 // pred_check
      _
    $region11: #{tpu_custom_call.1} parent=1 // pred_check_branch
      %40 = sbr.rel (0) target = $region13
    $region12: #{tpu_custom_call.1} parent=1 // pred_region
      %s42 = ssub.s32 32, 32
      %43 = vsyncadd [#allocation5], %s42
      %s45 = sshll.u32 [#allocation4], 4
      %s46 = int_to_ptr.vmem [resolvable:$true] %s45
      %48 = dma.vmem_to_hbm [thread:$0]  %s46, 32, %s3, [#allocation5]
    $region13: #{tpu_custom_call.1} parent=1 // pred_fallthru
      _
    // Predicated region
    $region14: #{tpu_custom_call.1} parent=1 // pred_check
      _
    $region15: #{tpu_custom_call.1} parent=1 // pred_check_branch
      %50 = sbr.rel (0) target = $region17
    $region16: #{tpu_custom_call.1} parent=1 // pred_region
      %51 = dma.done [#allocation5], 32
    $region17: #{tpu_custom_call.1} parent=1 // pred_fallthru
      _
    %52 = vsyncpa [#allocation5], 1

</llo_original>
